<compile_context>
chip_gen: v6e
topology: v6e:2x2x1
jax: 0.10.0
libtpu: 0.0.40
codegen_flags: <defaults>
</compile_context>

<pallas_src>
import functools
import math

import jax
import jax.numpy as jnp
from jax.experimental import pallas as pl
from jax.experimental.pallas import tpu as pltpu

LN_EPS = 1e-5                      # PyTorch nn.LayerNorm default
NEG_INF = -1e30                    # large-negative mask value (avoids inf-inf NaNs)
_VMEM_LIMIT = 48 * 1024 * 1024     # explicit scoped-VMEM budget (< v7x 64 MiB physical)


def _pick_tile(n, preferred=(256, 128, 64, 32, 16, 8)):
    """Largest preferred tile (multiple of 8, MXU-friendly) dividing n."""
    for t in preferred:
        if t <= n and n % t == 0:
            return t
    return n


def _layernorm(x, gamma, beta):
    mu = jnp.mean(x, axis=-1, keepdims=True)
    var = jnp.mean((x - mu) ** 2, axis=-1, keepdims=True)
    return (x - mu) * jax.lax.rsqrt(var + LN_EPS) * gamma + beta


# --------------------------------------------------------------------------
# Kernel 1: ln1 + fused QKV projection, tiled over rows of (B*T, C)
# --------------------------------------------------------------------------
def _ln_qkv_kernel(x_ref, g_ref, b_ref, w_ref, qkv_ref):
    x = x_ref[...]                                        # (TM, C) f32
    xn = _layernorm(x, g_ref[0], b_ref[0])                # f32 LN math
    qkv = jnp.dot(xn.astype(jnp.bfloat16), w_ref[...],    # bf16 in, f32 acc
                  preferred_element_type=jnp.float32)
    qkv_ref[...] = qkv.astype(qkv_ref.dtype)


def _ln_qkv(x2, gamma, beta, w_bf16):
    rows, C = x2.shape
    C3 = w_bf16.shape[1]
    tm = _pick_tile(rows)
    cost = pl.CostEstimate(
        flops=2 * rows * C * C3 + 10 * rows * C,
        transcendentals=rows,
        bytes_accessed=rows * C * 4 + C * C3 * 2 + rows * C3 * 2)
    return pl.pallas_call(
        _ln_qkv_kernel,
        out_shape=jax.ShapeDtypeStruct((rows, C3), jnp.bfloat16),
        grid=(rows // tm,),
        in_specs=[
            pl.BlockSpec((tm, C), lambda i: (i, 0)),      # x rows
            pl.BlockSpec((1, C), lambda i: (0, 0)),       # ln1 gamma
            pl.BlockSpec((1, C), lambda i: (0, 0)),       # ln1 beta
            pl.BlockSpec((C, C3), lambda i: (0, 0)),      # Wqkv (resident, bf16)
        ],
        out_specs=pl.BlockSpec((tm, C3), lambda i: (i, 0)),
        compiler_params=pltpu.CompilerParams(
            dimension_semantics=("parallel",),
            vmem_limit_bytes=_VMEM_LIMIT),
        cost_estimate=cost,
    )(x2, gamma, beta, w_bf16)


# --------------------------------------------------------------------------
# Kernel 2: flash-style causal attention over (B*H, T, hs)
# --------------------------------------------------------------------------
def _flash_attn_kernel(q_ref, k_ref, v_ref, o_ref, m_sc, l_sc, acc_sc,
                       *, sm_scale, tq, tk):
    qi = pl.program_id(1)
    kj = pl.program_id(2)

    @pl.when(kj == 0)
    def _init():
        m_sc[...] = jnp.full_like(m_sc, NEG_INF)
        l_sc[...] = jnp.zeros_like(l_sc)
        acc_sc[...] = jnp.zeros_like(acc_sc)

    # Skip KV tiles that lie entirely above the causal diagonal.
    @pl.when(kj * tk <= qi * tq + (tq - 1))
    def _update():
        q = q_ref[0]                                      # (tq, hs) bf16
        k = k_ref[0]                                      # (tk, hs) bf16
        v = v_ref[0]                                      # (tk, hs) bf16
        # contract last dims directly -- no materialised k.T (XLU-free path)
        s = jax.lax.dot_general(
            q, k, (((1,), (1,)), ((), ())),
            preferred_element_type=jnp.float32) * sm_scale       # (tq, tk) f32
        row = qi * tq + jax.lax.broadcasted_iota(jnp.int32, (tq, tk), 0)
        col = kj * tk + jax.lax.broadcasted_iota(jnp.int32, (tq, tk), 1)
        s = jnp.where(col <= row, s, NEG_INF)

        m_prev = m_sc[...]
        m_new = jnp.maximum(m_prev, s.max(axis=-1, keepdims=True))
        alpha = jnp.exp(m_prev - m_new)
        p = jnp.exp(s - m_new)
        l_sc[...] = alpha * l_sc[...] + p.sum(axis=-1, keepdims=True)
        acc_sc[...] = alpha * acc_sc[...] + jnp.dot(
            p.astype(v.dtype), v, preferred_element_type=jnp.float32)
        m_sc[...] = m_new

    @pl.when(kj == pl.num_programs(2) - 1)
    def _finalize():
        inv_l = pl.reciprocal(l_sc[...], approx=True)     # EUP slot, ~free
        o_ref[0] = (acc_sc[...] * inv_l).astype(o_ref.dtype)


def _flash_attention(q, k, v, sm_scale):
    BH, T, hs = q.shape
    tq = _pick_tile(T)
    tk = _pick_tile(T)
    kernel = functools.partial(_flash_attn_kernel, sm_scale=sm_scale,
                               tq=tq, tk=tk)
    cost = pl.CostEstimate(
        flops=4 * BH * T * T * hs,
        transcendentals=BH * T * T,
        bytes_accessed=4 * BH * T * hs * 2)
    return pl.pallas_call(
        kernel,
        out_shape=jax.ShapeDtypeStruct((BH, T, hs), jnp.bfloat16),
        grid=(BH, T // tq, T // tk),
        in_specs=[
            pl.BlockSpec((1, tq, hs), lambda b, i, j: (b, i, 0)),
            pl.BlockSpec((1, tk, hs), lambda b, i, j: (b, j, 0)),
            pl.BlockSpec((1, tk, hs), lambda b, i, j: (b, j, 0)),
        ],
        out_specs=pl.BlockSpec((1, tq, hs), lambda b, i, j: (b, i, 0)),
        scratch_shapes=[
            pltpu.VMEM((tq, 1), jnp.float32),    # running max
            pltpu.VMEM((tq, 1), jnp.float32),    # running denominator
            pltpu.VMEM((tq, hs), jnp.float32),   # output accumulator
        ],
        compiler_params=pltpu.CompilerParams(
            dimension_semantics=("parallel", "parallel", "arbitrary"),
            vmem_limit_bytes=_VMEM_LIMIT),
        cost_estimate=cost,
    )(q, k, v)


# --------------------------------------------------------------------------
# Kernel 3: c_proj + residual + ln2 + MLP + residual, tiled over rows
# --------------------------------------------------------------------------
def _proj_mlp_kernel(y_ref, x_ref, wproj_ref, g_ref, b_ref,
                     w1_ref, b1_ref, w2_ref, b2_ref, out_ref):
    x = x_ref[...]                                        # (TM, C) f32 block input
    proj = jnp.dot(y_ref[...], wproj_ref[...],            # c_proj (no bias)
                   preferred_element_type=jnp.float32)
    out1 = proj + x                                       # first residual
    h = _layernorm(out1, g_ref[0], b_ref[0])              # ln2 (f32)
    h1 = jnp.dot(h.astype(jnp.bfloat16), w1_ref[...],
                 preferred_element_type=jnp.float32) + b1_ref[0]
    h1 = jax.nn.gelu(h1, approximate=False)               # exact erf, matches nn.GELU()
    ff = jnp.dot(h1.astype(jnp.bfloat16), w2_ref[...],
                 preferred_element_type=jnp.float32) + b2_ref[0]
    # second residual adds the ORIGINAL block input x (matches PyTorch code)
    out_ref[...] = ff + x


def _proj_mlp(y2, x2, wproj, ln2_g, ln2_b, w1, b1, w2, b2):
    rows, C = x2.shape
    F = w1.shape[1]
    tm = _pick_tile(rows)
    cost = pl.CostEstimate(
        flops=2 * rows * (C * C + 2 * C * F) + 20 * rows * C,
        transcendentals=rows * (F + 1),
        bytes_accessed=(rows * C * (4 + 4 + 2)
                        + (C * C + 2 * C * F) * 2 + (C + F) * 4))
    return pl.pallas_call(
        _proj_mlp_kernel,
        out_shape=jax.ShapeDtypeStruct((rows, C), jnp.float32),
        grid=(rows // tm,),
        in_specs=[
            pl.BlockSpec((tm, C), lambda i: (i, 0)),      # attention out (bf16)
            pl.BlockSpec((tm, C), lambda i: (i, 0)),      # block input x (f32)
            pl.BlockSpec((C, C), lambda i: (0, 0)),       # Wproj bf16
            pl.BlockSpec((1, C), lambda i: (0, 0)),       # ln2 gamma
            pl.BlockSpec((1, C), lambda i: (0, 0)),       # ln2 beta
            pl.BlockSpec((C, F), lambda i: (0, 0)),       # W1 bf16
            pl.BlockSpec((1, F), lambda i: (0, 0)),       # b1 f32
            pl.BlockSpec((F, C), lambda i: (0, 0)),       # W2 bf16
            pl.BlockSpec((1, C), lambda i: (0, 0)),       # b2 f32
        ],
        out_specs=pl.BlockSpec((tm, C), lambda i: (i, 0)),
        compiler_params=pltpu.CompilerParams(
            dimension_semantics=("parallel",),
            vmem_limit_bytes=_VMEM_LIMIT),
        cost_estimate=cost,
    )(y2, x2, wproj, ln2_g, ln2_b, w1, b1, w2, b2)


# --------------------------------------------------------------------------
# Full TransformerBlock forward (Pallas)
# --------------------------------------------------------------------------
def transformer_block(x, p, n_head):
    """x: (B, T, C) float32 -> (B, T, C) float32."""
    B, T, C = x.shape
    H = n_head
    hs = C // H
    rows = B * T
    bf16 = jnp.bfloat16

    x2 = x.reshape(rows, C)

    # 1) ln1 + fused QKV projection (row tiled)
    qkv = _ln_qkv(x2, p["ln1_g"], p["ln1_b"], p["wqkv"].astype(bf16))

    # layout plumbing (plain XLA glue): (rows, 3C) -> q/k/v of shape (B*H, T, hs)
    qkv = qkv.reshape(B, T, 3, H, hs).transpose(2, 0, 3, 1, 4)   # (3, B, H, T, hs)
    q = qkv[0].reshape(B * H, T, hs)
    k = qkv[1].reshape(B * H, T, hs)
    v = qkv[2].reshape(B * H, T, hs)

    # 2) flash-style causal attention; all (batch, head) pairs on the grid
    y = _flash_attention(q, k, v, 1.0 / math.sqrt(hs))           # (B*H, T, hs)
    y2 = y.reshape(B, H, T, hs).transpose(0, 2, 1, 3).reshape(rows, C)

    # 3) c_proj + residual + ln2 + MLP + residual (row tiled)
    out = _proj_mlp(y2, x2, p["wproj"].astype(bf16), p["ln2_g"], p["ln2_b"],
                    p["w1"].astype(bf16), p["b1"], p["w2"].astype(bf16),
                    p["b2"])
    return out.reshape(B, T, C)


# --------------------------------------------------------------------------
# Pure-JAX f32 reference (mirrors the PyTorch module exactly)
# --------------------------------------------------------------------------
def transformer_block_ref(x, p, n_head):
    B, T, C = x.shape
    hs = C // n_head

    def ln(v, g, b):
        mu = jnp.mean(v, axis=-1, keepdims=True)
        var = jnp.mean((v - mu) ** 2, axis=-1, keepdims=True)
        return (v - mu) * jax.lax.rsqrt(var + LN_EPS) * g + b

    xn = ln(x, p["ln1_g"][0], p["ln1_b"][0])
    qkv = xn @ p["wqkv"]
    q, k, v = jnp.split(qkv, 3, axis=-1)
    q = q.reshape(B, T, n_head, hs).transpose(0, 2, 1, 3)
    k = k.reshape(B, T, n_head, hs).transpose(0, 2, 1, 3)
    v = v.reshape(B, T, n_head, hs).transpose(0, 2, 1, 3)
    att = jnp.einsum("bhqd,bhkd->bhqk", q, k) / math.sqrt(hs)
    mask = jnp.tril(jnp.ones((T, T), jnp.bool_))
    att = jnp.where(mask, att, -jnp.inf)
    att = jax.nn.softmax(att, axis=-1)
    y = jnp.einsum("bhqk,bhkd->bhqd", att, v)
    y = y.transpose(0, 2, 1, 3).reshape(B, T, C)
    out1 = y @ p["wproj"] + x
    h = ln(out1, p["ln2_g"][0], p["ln2_b"][0])
    h1 = jax.nn.gelu(h @ p["w1"] + p["b1"][0], approximate=False)
    ff = h1 @ p["w2"] + p["b2"][0]
    return ff + x


# --------------------------------------------------------------------------
# Deterministic parameter construction
# --------------------------------------------------------------------------
def init_block_params(key, emb_size):
    C = emb_size
    ks = jax.random.split(key, 10)

    def w(k, shape, scale=0.02):
        return jax.random.normal(k, shape, jnp.float32) * scale

    return {
        "ln1_g": 1.0 + w(ks[0], (1, C)),
        "ln1_b": w(ks[1], (1, C)),
        "wqkv": w(ks[2], (C, 3 * C)),
        "wproj": w(ks[3], (C, C)),
        "ln2_g": 1.0 + w(ks[4], (1, C)),
        "ln2_b": w(ks[5], (1, C)),
        "w1": w(ks[6], (C, 4 * C)),
        "b1": w(ks[7], (1, 4 * C)),
        "w2": w(ks[8], (4 * C, C)),
        "b2": w(ks[9], (1, C)),
    }


if __name__ == "__main__":
    # Config mirroring model_V2: emb=32, heads=4, block_size (T)=8, batch=2
    EMB, HEADS, T, BATCH = 32, 4, 8, 2

    key = jax.random.PRNGKey(0)
    k_param, k_x = jax.random.split(key)
    params = init_block_params(k_param, EMB)
    x = jax.random.normal(k_x, (BATCH, T, EMB), jnp.float32)

    out = transformer_block(x, params, HEADS)
    jax.block_until_ready(out)
    assert out.shape == (BATCH, T, EMB)

    # Validate against the pure-JAX f32 reference (bf16 matmuls -> loose tol).
    ref = transformer_block_ref(x, params, HEADS)
    err = float(jnp.max(jnp.abs(out - ref)))
    assert err < 5e-2, f"max abs error vs reference too large: {err}"
    print("KERNEL_OK")
</pallas_src>

<mosaic_0001>
module attributes {stable_mosaic.version = 11 : i64} {
  func.func @_ln_qkv_kernel(%arg0: i32, %arg1: memref<16x32xf32, #tpu.memory_space<vmem>>, %arg2: memref<1x32xf32, #tpu.memory_space<vmem>>, %arg3: memref<1x32xf32, #tpu.memory_space<vmem>>, %arg4: memref<32x96xbf16, #tpu.memory_space<vmem>>, %arg5: memref<16x96xbf16, #tpu.memory_space<vmem>>) attributes {dimension_semantics = [#tpu.dimension_semantics<parallel>], iteration_bounds = array<i64: 1>, scalar_prefetch = 0 : i64, scratch_operands = 0 : i64, tpu.core_type = #tpu.core_type<tc>, window_params = [{transform_indices = @transform_0, window_bounds = array<i64: 16, 32>}, {pipeline_mode = #tpu.pipeline_mode<synchronous>, transform_indices = @transform_1, window_bounds = array<i64: 1, 32>}, {pipeline_mode = #tpu.pipeline_mode<synchronous>, transform_indices = @transform_2, window_bounds = array<i64: 1, 32>}, {pipeline_mode = #tpu.pipeline_mode<synchronous>, transform_indices = @transform_3, window_bounds = array<i64: 32, 96>}, {transform_indices = @transform_4, window_bounds = array<i64: 16, 96>}]} {
    %c0 = arith.constant 0 : index
    %c0_0 = arith.constant 0 : index
    %0 = vector.load %arg1[%c0, %c0_0] : memref<16x32xf32, #tpu.memory_space<vmem>>, vector<16x32xf32>
    %c0_1 = arith.constant 0 : index
    %c0_2 = arith.constant 0 : index
    %1 = vector.load %arg2[%c0_1, %c0_2] : memref<1x32xf32, #tpu.memory_space<vmem>>, vector<1x32xf32>
    %2 = vector.shape_cast %1 : vector<1x32xf32> to vector<32xf32>
    %c0_3 = arith.constant 0 : index
    %c0_4 = arith.constant 0 : index
    %3 = vector.load %arg3[%c0_3, %c0_4] : memref<1x32xf32, #tpu.memory_space<vmem>>, vector<1x32xf32>
    %4 = vector.shape_cast %3 : vector<1x32xf32> to vector<32xf32>
    %cst = arith.constant dense<0.000000e+00> : vector<16xf32>
    %5 = vector.multi_reduction <add>, %0, %cst [1] : vector<16x32xf32> to vector<16xf32>
    %6 = vector.shape_cast %5 : vector<16xf32> to vector<16x1xf32>
    %cst_5 = arith.constant 3.200000e+01 : f32
    %7 = vector.broadcast %cst_5 : f32 to vector<16x1xf32>
    %8 = arith.divf %6, %7 : vector<16x1xf32>
    %9 = vector.broadcast %8 : vector<16x1xf32> to vector<16x32xf32>
    %10 = arith.subf %0, %9 : vector<16x32xf32>
    %11 = arith.mulf %10, %10 : vector<16x32xf32>
    %cst_6 = arith.constant dense<0.000000e+00> : vector<16xf32>
    %12 = vector.multi_reduction <add>, %11, %cst_6 [1] : vector<16x32xf32> to vector<16xf32>
    %13 = vector.shape_cast %12 : vector<16xf32> to vector<16x1xf32>
    %cst_7 = arith.constant 3.200000e+01 : f32
    %14 = vector.broadcast %cst_7 : f32 to vector<16x1xf32>
    %15 = arith.divf %13, %14 : vector<16x1xf32>
    %16 = vector.broadcast %8 : vector<16x1xf32> to vector<16x32xf32>
    %17 = arith.subf %0, %16 : vector<16x32xf32>
    %cst_8 = arith.constant 9.99999974E-6 : f32
    %18 = vector.broadcast %cst_8 : f32 to vector<16x1xf32>
    %19 = arith.addf %15, %18 : vector<16x1xf32>
    %20 = math.rsqrt %19 : vector<16x1xf32>
    %21 = vector.broadcast %20 : vector<16x1xf32> to vector<16x32xf32>
    %22 = arith.mulf %17, %21 : vector<16x32xf32>
    %23 = vector.shape_cast %2 : vector<32xf32> to vector<1x32xf32>
    %24 = vector.broadcast %23 : vector<1x32xf32> to vector<16x32xf32>
    %25 = arith.mulf %22, %24 : vector<16x32xf32>
    %26 = vector.shape_cast %4 : vector<32xf32> to vector<1x32xf32>
    %27 = vector.broadcast %26 : vector<1x32xf32> to vector<16x32xf32>
    %28 = arith.addf %25, %27 : vector<16x32xf32>
    %29 = arith.truncf %28 : vector<16x32xf32> to vector<16x32xbf16>
    %c0_9 = arith.constant 0 : index
    %c0_10 = arith.constant 0 : index
    %30 = vector.load %arg4[%c0_9, %c0_10] : memref<32x96xbf16, #tpu.memory_space<vmem>>, vector<32x96xbf16>
    %cst_11 = arith.constant dense<0.000000e+00> : vector<16x96xf32>
    %31 = tpu.matmul %29, %30, %cst_11 {dimension_numbers = #tpu.dot_dimension_numbers<[1], [0], [0], [1], [0, 0, 1, 1], [], []>} : vector<16x32xbf16>, vector<32x96xbf16>, vector<16x96xf32> -> vector<16x96xf32>
    %32 = arith.truncf %31 : vector<16x96xf32> to vector<16x96xbf16>
    %c0_12 = arith.constant 0 : index
    %c0_13 = arith.constant 0 : index
    %33 = vector.load %arg5[%c0_12, %c0_13] : memref<16x96xbf16, #tpu.memory_space<vmem>>, vector<16x96xbf16>
    tpu.vector_store %arg5[%c0_12, %c0_13], %32 {strides = array<i32>} : memref<16x96xbf16, #tpu.memory_space<vmem>>, vector<16x96xbf16>,
    return
  }
  func.func @transform_0(%arg0: i32) -> (i32, i32) {
    %c0_i32 = arith.constant 0 : i32
    %c0_i32_0 = arith.constant 0 : i32
    return %arg0, %c0_i32 : i32, i32
  }
  func.func @transform_1(%arg0: i32) -> (i32, i32) {
    %c0_i32 = arith.constant 0 : i32
    %c0_i32_0 = arith.constant 0 : i32
    %c0_i32_1 = arith.constant 0 : i32
    return %c0_i32, %c0_i32_0 : i32, i32
  }
  func.func @transform_2(%arg0: i32) -> (i32, i32) {
    %c0_i32 = arith.constant 0 : i32
    %c0_i32_0 = arith.constant 0 : i32
    %c0_i32_1 = arith.constant 0 : i32
    return %c0_i32, %c0_i32_0 : i32, i32
  }
  func.func @transform_3(%arg0: i32) -> (i32, i32) {
    %c0_i32 = arith.constant 0 : i32
    %c0_i32_0 = arith.constant 0 : i32
    %c0_i32_1 = arith.constant 0 : i32
    return %c0_i32, %c0_i32_0 : i32, i32
  }
  func.func @transform_4(%arg0: i32) -> (i32, i32) {
    %c0_i32 = arith.constant 0 : i32
    %c0_i32_0 = arith.constant 0 : i32
    return %arg0, %c0_i32 : i32, i32
  }
}

</mosaic_0001>

<llo_original>
// kernel: tpu_custom_call.1
$region0: #{tpu_custom_call.1}
  #allocation0 [shape = 'u32[]', space=smem, size = 0x4, offset = 0x4, fixed_abs, tag = 'smem constant byte address 0x4 - core index']
  #allocation1 [shape = 'u32[144,128]{1,0:T(1,128)}', space=vmem, size = 0x12000, scoped, tag = 'internal scratch']
  %s0 = inlined_call_operand.hbm [shape: f32[16,32], index: 0, kind: input, shape index: {}]
  %s1 = inlined_call_operand.vmem [shape: f32[1,32], index: 1, kind: input, shape index: {}]
  %s2 = inlined_call_operand.vmem [shape: f32[1,32], index: 2, kind: input, shape index: {}]
  %s3 = inlined_call_operand.hbm [shape: bf16[32,96], index: 3, kind: input, shape index: {}]
  %s4 = inlined_call_operand.hbm [shape: bf16[16,96], index: 4, kind: output, shape index: {}]
  %s5 = sld [smem:[#allocation0]]
  $region34: #{tpu_custom_call.1} parent=0
    _
  %s7 = ssub.s32 1, %s5
  %s8 = scalar_select 0, %s7, %s5
  $region1: #{tpu_custom_call.1} parent=0
    #allocation2 [shape = 'u8[8192]{0}', space=vmem, size = 0x2000, scoped, tag = 'input window, operand 0, single buffered']
    #allocation3 [shape = 's32[1]{0}', space=sflag, size = 0x4, scoped, tag = 'scoped memory for tpu_custom_call.1']
    #allocation4 [shape = 's32[1]{0}', space=sflag, size = 0x4, scoped, tag = 'scoped memory for tpu_custom_call.1']
    #allocation5 [shape = 'u8[8192]{0}', space=vmem, size = 0x2000, scoped, tag = 'input window, operand 3, single buffered']
    #allocation6 [shape = 's32[1]{0}', space=sflag, size = 0x4, scoped, tag = 'scoped memory for tpu_custom_call.1']
    #allocation7 [shape = 'u8[4096]{0}', space=vmem, size = 0x1000, scoped, tag = 'output window, operand 0, single buffered']
    %9 = vsyncpa [#allocation3], 0
    %10 = vsyncpa [#allocation6], 0
    %11 = vsyncpa [#allocation4], 0
    // Predicated region
    $region2: #{tpu_custom_call.1} parent=1 // pred_check
      _
    $region3: #{tpu_custom_call.1} parent=1 // pred_check_branch
      %13 = sbr.rel (0) target = $region5
    $region4: #{tpu_custom_call.1} parent=1 // pred_region
      %s15 = ssub.s32 256, 256
      %16 = vsyncadd [#allocation3], %s15
      %s17 = sshll.u32 [#allocation2], 4
      %s18 = int_to_ptr.vmem [resolvable:$true] %s17
      %23 = dma.hbm_to_vmem [thread:$0]  %s0, 256, %s18, [#allocation3], 128, 128, 8
    $region5: #{tpu_custom_call.1} parent=1 // pred_fallthru
      _
    // Predicated region
    $region6: #{tpu_custom_call.1} parent=1 // pred_check
      _
    $region7: #{tpu_custom_call.1} parent=1 // pred_check_branch
      %25 = sbr.rel (0) target = $region9
    $region8: #{tpu_custom_call.1} parent=1 // pred_region
      _
    $region9: #{tpu_custom_call.1} parent=1 // pred_fallthru
      _
    // Predicated region
    $region10: #{tpu_custom_call.1} parent=1 // pred_check
      _
    $region11: #{tpu_custom_call.1} parent=1 // pred_check_branch
      %27 = sbr.rel (0) target = $region13
    $region12: #{tpu_custom_call.1} parent=1 // pred_region
      _
    $region13: #{tpu_custom_call.1} parent=1 // pred_fallthru
      _
    // Predicated region
    $region14: #{tpu_custom_call.1} parent=1 // pred_check
      _
    $region15: #{tpu_custom_call.1} parent=1 // pred_check_branch
      %29 = sbr.rel (0) target = $region17
    $region16: #{tpu_custom_call.1} parent=1 // pred_region
      %s31 = ssub.s32 256, 256
      %32 = vsyncadd [#allocation6], %s31
      %s33 = sshll.u32 [#allocation5], 4
      %s34 = int_to_ptr.vmem [resolvable:$true] %s33
      %39 = dma.hbm_to_vmem [thread:$0]  %s3, 256, %s34, [#allocation6], 64, 64, 4
    $region17: #{tpu_custom_call.1} parent=1 // pred_fallthru
      _
    // Predicated region
    $region18: #{tpu_custom_call.1} parent=1 // pred_check
      _
    $region19: #{tpu_custom_call.1} parent=1 // pred_check_branch
      %41 = sbr.rel (0) target = $region21
    $region20: #{tpu_custom_call.1} parent=1 // pred_region
      %42 = dma.done [#allocation3], 256
    $region21: #{tpu_custom_call.1} parent=1 // pred_fallthru
      _
    // Predicated region
    $region22: #{tpu_custom_call.1} parent=1 // pred_check
      _
    $region23: #{tpu_custom_call.1} parent=1 // pred_check_branch
      %44 = sbr.rel (0) target = $region25
    $region24: #{tpu_custom_call.1} parent=1 // pred_region
      %45 = dma.done [#allocation6], 256
    $region25: #{tpu_custom_call.1} parent=1 // pred_fallthru
      _
    %v47 = vld [vmem:[#allocation2] sm:$0xff]
    %v48 = vld [vmem:[#allocation2 + $0x8] sm:$0xff]
    %v49 = vld [vmem:[%s1] sm:$0x1]
    %v50 = vld [vmem:[%s2] sm:$0x1]
    %vm51 = vcmask 261120
    %v52 = vsel %vm51, %v47, 0.0
    %53 = vadd.xlane.f32.xlu0 %v52
    %v54 = vpop.xlane.xlu0 %53
    %v55 = vsel %vm51, %v48, 0.0
    %56 = vadd.xlane.f32.xlu0 %v55
    %v57 = vpop.xlane.xlu0 %56
    %v58 = vrcp.pop 32.0
    %v59 = vmul.f32 %v54, %v58
    %v60 = vmul.f32 %v57, %v58
    %v61 = vsub.f32 %v47, %v59
    %v62 = vsub.f32 %v48, %v60
    %v63 = vmul.f32 %v61, %v61
    %v64 = vmul.f32 %v62, %v62
    %v65 = vsel %vm51, %v63, 0.0
    %66 = vadd.xlane.f32.xlu0 %v65
    %v67 = vpop.xlane.xlu0 %66
    %v68 = vsel %vm51, %v64, 0.0
    %69 = vadd.xlane.f32.xlu0 %v68
    %v70 = vpop.xlane.xlu0 %69
    %v71 = vmul.f32 %v67, %v58
    %v72 = vmul.f32 %v70, %v58
    %v73 = vadd.f32 %v71, 1e-05
    %v74 = vadd.f32 %v72, 1e-05
    %v75 = vrsqrt.pop %v73
    %v76 = vrsqrt.pop %v74
    %v77 = vmul.f32 %v61, %v75
    %v78 = vmul.f32 %v62, %v76
    %v80 = vlaneseq
    %v81 = vshrl.u32 %v80, 7
    %v82 = vsub.s32 0, %v81
    %v83 = vrot.slane %v49, %v82
    %v85 = vmul.f32 %v77, %v83
    %v86 = vmul.f32 %v78, %v83
    %v88 = vlaneseq
    %v89 = vshrl.u32 %v88, 7
    %v90 = vsub.s32 0, %v89
    %v91 = vrot.slane %v50, %v90
    %v93 = vadd.f32 %v85, %v91
    %v94 = vadd.f32 %v86, %v91
    %v95 = vpack.c.bf16 %v94, %v93
    %v96 = vld [vmem:[#allocation5] sm:$0xf]
    %v97 = vld [vmem:[#allocation5 + $0x4] sm:$0xf]
    %v98 = vld [vmem:[#allocation5 + $0x8] sm:$0xf]
    %v99 = vld [vmem:[#allocation5 + $0xc] sm:$0xf]
    %v104 = vunpack.c.l.b16 %v96
    %v105 = vunpack.c.l.b16 %v97
    %v106 = vunpack.c.l.b16 %v98
    %v107 = vunpack.c.l.b16 %v99
    %v108 = vpack.c.b16 %v105, %v104
    %v109 = vpack.c.b16 %v107, %v106
    %v113 = vsel %vm51, %v95, 0
    %115 = vmatprep.subr.bf16.mxu0 0
    %116 = vmatpush1.bf16.msra.mxu0 0
    %117 = vmatprep.subr.bf16.mxu0 0
    %118 = vmatpush1.bf16.msra.mxu0 0
    %119 = vmatprep.subr.bf16.mxu0 0
    %120 = vmatpush1.bf16.msra.mxu0 0
    %121 = vmatprep.subr.bf16.mxu0 0
    %122 = vmatpush1.bf16.msra.mxu0 0
    %123 = vmatprep.subr.bf16.mxu0 0
    %124 = vmatpush1.bf16.msra.mxu0 0
    %125 = vmatprep.subr.bf16.mxu0 0
    %126 = vmatpush1.bf16.msra.mxu0 0
    %127 = vmatprep.subr.bf16.mxu0 0
    %128 = vmatpush1.bf16.msra.mxu0 %v109
    %129 = vmatprep.subr.bf16.mxu0 0
    %130 = vmatpush1.bf16.msra.mxu0 %v108
    %131 = vmatprep.subr.bf16.mxu0 0
    %132 = vmatpush2.bf16.msra.mxu0 0
    %133 = vmatprep.subr.bf16.mxu0 0
    %134 = vmatpush2.bf16.msra.mxu0 0
    %135 = vmatprep.subr.bf16.mxu0 0
    %136 = vmatpush2.bf16.msra.mxu0 0
    %137 = vmatprep.subr.bf16.mxu0 0
    %138 = vmatpush2.bf16.msra.mxu0 0
    %139 = vmatprep.subr.bf16.mxu0 0
    %140 = vmatpush2.bf16.msra.mxu0 0
    %141 = vmatprep.subr.bf16.mxu0 0
    %142 = vmatpush2.bf16.msra.mxu0 0
    %143 = vmatprep.subr.bf16.mxu0 0
    %144 = vmatpush2.bf16.msra.mxu0 0
    %145 = vmatprep.subr.bf16.mxu0 0
    %146 = vmatpush2.bf16.msra.mxu0 0
    %147 = vmatprep.mubr.bf16.mxu0 0
    %148 = vmatmul.mubr.bf16.gmra.mxu0 %v113
    %v149 = vpop.f32.mrf.mxu0
    %v150 = vadd.f32 0.0, %v149
    %v151 = vpop.f32.mrf.mxu0
    %v152 = vpop.f32.mrf.mxu0
    %v153 = vadd.f32 0.0, %v152
    %v154 = vpop.f32.mrf.mxu0
    %155 = vdwg.mxu0
    %v156 = vpack.c.bf16 %v153, %v150
    %v158 = vunpack.c.l.b16 %v156
    %v159 = vunpack.c.h.b16 %v156
    %v160 = vpack.c.b16 %v158, %v158
    %v161 = vpack.c.b16 %v159, %v159
    %vm164 = vcmask 781312
    %165 = vst.msk [vmem:[#allocation7] sm:$0xf] %vm164, %v160
    %166 = vst.msk [vmem:[#allocation7 + $0x4] sm:$0xf] %vm164, %v161
    // Predicated region
    $region26: #{tpu_custom_call.1} parent=1 // pred_check
      _
    $region27: #{tpu_custom_call.1} parent=1 // pred_check_branch
      %168 = sbr.rel (0) target = $region29
    $region28: #{tpu_custom_call.1} parent=1 // pred_region
      %s170 = ssub.s32 128, 128
      %171 = vsyncadd [#allocation4], %s170
      %s172 = sshll.u32 [#allocation7], 4
      %s173 = int_to_ptr.vmem [resolvable:$true] %s172
      %178 = dma.vmem_to_hbm [thread:$0]  %s173, 128, %s4, [#allocation4], 64, 64, 4
    $region29: #{tpu_custom_call.1} parent=1 // pred_fallthru
      _
    // Predicated region
    $region30: #{tpu_custom_call.1} parent=1 // pred_check
      _
    $region31: #{tpu_custom_call.1} parent=1 // pred_check_branch
      %180 = sbr.rel (0) target = $region33
    $region32: #{tpu_custom_call.1} parent=1 // pred_region
      %181 = dma.done [#allocation4], 128
    $region33: #{tpu_custom_call.1} parent=1 // pred_fallthru
      _
    %182 = vsyncpa [#allocation3], 1
    %183 = vsyncpa [#allocation6], 1
    %184 = vsyncpa [#allocation4], 1

</llo_original>
